<compile_context>
chip_gen: v7x
topology: tpu7x:2x2x1
jax: 0.10.0
libtpu: 0.0.40
codegen_flags: <defaults>
</compile_context>

<pallas_src>
import functools
import math
import random

import jax
import jax.numpy as jnp
from jax.experimental import pallas as pl
from jax.experimental.pallas import tpu as pltpu


def _phase_shuffle_kernel(x_ref, o_ref, *, shift):
    """out[r, i] = x[r, (i - shift) % W] on a (rows, W) tile (lane-axis rotate)."""
    x = x_ref[...]
    if shift == 0:  # static Python branch; identity copy
        o_ref[...] = x
    else:
        # Single XLU lane rotation; keeps load/store slots free for the mem-bound copy.
        o_ref[...] = pltpu.roll(x, shift, axis=1)


def _choose_block_rows(n_rows, width, itemsize, target_bytes=1 << 20):
    """Rows per block: ~1 MiB blocks so in+out double-buffering (~4 MiB) fits every
    generation's scoped VMEM (16 MiB v5e default, 32 MiB v6e/v7x, 64 MiB v7x physical)."""
    sublane = max(8, 32 // itemsize)  # (8,128) f32 / (16,128) bf16 / (32,128) int8 tiles
    rows = target_bytes // max(1, width * itemsize)
    rows = min(rows, n_rows)
    rows = (rows // sublane) * sublane
    if rows < sublane or rows >= n_rows:
        return n_rows  # single full-extent block (always a legal block shape)
    return int(rows)


@functools.partial(jax.jit, static_argnums=(1,))
def _phase_shuffle_pallas(x, shift):
    orig_shape = x.shape
    width = orig_shape[-1]
    n_rows = math.prod(orig_shape[:-1])        # collapse (B, C, H) -> one sublane axis
    x2 = x.reshape(n_rows, width)              # metadata-only reshape (row-major)
    itemsize = jnp.dtype(x.dtype).itemsize
    block_rows = _choose_block_rows(n_rows, width, itemsize)

    out = pl.pallas_call(
        functools.partial(_phase_shuffle_kernel, shift=shift),
        out_shape=jax.ShapeDtypeStruct((n_rows, width), x.dtype),
        grid=(pl.cdiv(n_rows, block_rows),),
        in_specs=[pl.BlockSpec((block_rows, width), lambda r: (r, 0))],
        out_specs=pl.BlockSpec((block_rows, width), lambda r: (r, 0)),
        compiler_params=pltpu.CompilerParams(
            dimension_semantics=("parallel",),   # shard row-blocks across megacore / 2 TCs
            vmem_limit_bytes=32 * 1024 * 1024,
        ),
    )(x2)
    return out.reshape(orig_shape)


def phase_shuffle_2d(x, move):
    """out[..., i] = x[..., (i + move) % W]  (PhaseShuffle2d.forward with explicit move)."""
    # TODO(synk): `move` could instead be fed via PrefetchScalarGridSpec + dynamic pltpu.roll;
    # kept static here (jit-cached, at most 2n+1 compiled variants) for simplicity/safety.
    move = int(move)
    width = x.shape[-1]
    shift = (-move) % width
    if shift == 0:
        return x
    if width < 128 or width % 128 != 0:
        # Lane-sparse output -> masked vst at low lane utilization; XLA's fused roll wins here.
        return jnp.roll(x, -move, axis=-1)
    return _phase_shuffle_pallas(x, shift)


class PhaseShuffle2d:
    """JAX/Pallas port of the PyTorch PhaseShuffle2d module (host RNG kept identical)."""

    def __init__(self, n=2):
        self.n = n
        self.random = random.Random(1)  # deterministic, matches reference

    def __call__(self, x, move=None):
        if move is None:
            move = self.random.randint(-self.n, self.n)
        if move == 0:
            return x
        return phase_shuffle_2d(x, move)


if __name__ == "__main__":
    key = jax.random.PRNGKey(0)

    # Lane-dense shape (W multiple of 128) -> exercises the Pallas kernel path.
    B, C, H, W = 2, 4, 16, 128
    x = jax.random.normal(key, (B, C, H, W), dtype=jnp.float32)

    module = PhaseShuffle2d(n=2)
    move = module.random.randint(-module.n, module.n)  # first draw of the reference module
    out = jax.block_until_ready(module(x, move))
    ref = jnp.roll(x, -move, axis=-1) if move != 0 else x
    assert out.shape == x.shape and out.dtype == x.dtype
    assert jnp.allclose(out, ref), "mismatch vs reference roll"

    # Exercise every nonzero shift in [-n, n] through the Pallas path (jit-cached per shift).
    for m in (-2, -1, 1, 2):
        o = jax.block_until_ready(phase_shuffle_2d(x, m))
        assert jnp.allclose(o, jnp.roll(x, -m, axis=-1)), f"mismatch for move={m}"
    assert jnp.array_equal(phase_shuffle_2d(x, 0), x)  # identity fast path

    # Small lane-sparse shape from the original spec (W=16 < 128) -> XLA fallback path.
    x_small = jax.random.normal(jax.random.PRNGKey(0), (2, 4, 16, 16), dtype=jnp.float32)
    o_small = jax.block_until_ready(phase_shuffle_2d(x_small, 1))
    assert jnp.allclose(o_small, jnp.roll(x_small, -1, axis=-1)), "mismatch on fallback path"

    print("KERNEL_OK")
</pallas_src>

<mosaic_0001>
module attributes {stable_mosaic.version = 11 : i64} {
  func.func @_phase_shuffle_kernel(%arg0: i32, %arg1: memref<128x128xf32, #tpu.memory_space<vmem>>, %arg2: memref<128x128xf32, #tpu.memory_space<vmem>>) attributes {dimension_semantics = [#tpu.dimension_semantics<parallel>], iteration_bounds = array<i64: 1>, scalar_prefetch = 0 : i64, scratch_operands = 0 : i64, tpu.core_type = #tpu.core_type<tc>, window_params = [{transform_indices = @transform_0, window_bounds = array<i64: 128, 128>}, {transform_indices = @transform_1, window_bounds = array<i64: 128, 128>}]} {
    %c0 = arith.constant 0 : index
    %c0_0 = arith.constant 0 : index
    %0 = vector.load %arg1[%c0, %c0_0] : memref<128x128xf32, #tpu.memory_space<vmem>>, vector<128x128xf32>
    %c1_i32 = arith.constant 1 : i32
    %1 = tpu.dynamic_rotate %0 by %c1_i32 dim 1 : vector<128x128xf32>, i32 -> vector<128x128xf32>
    %c0_1 = arith.constant 0 : index
    %c0_2 = arith.constant 0 : index
    %2 = vector.load %arg2[%c0_1, %c0_2] : memref<128x128xf32, #tpu.memory_space<vmem>>, vector<128x128xf32>
    tpu.vector_store %arg2[%c0_1, %c0_2], %1 {strides = array<i32>} : memref<128x128xf32, #tpu.memory_space<vmem>>, vector<128x128xf32>,
    return
  }
  func.func @transform_0(%arg0: i32) -> (i32, i32) {
    %c0_i32 = arith.constant 0 : i32
    %c0_i32_0 = arith.constant 0 : i32
    return %arg0, %c0_i32 : i32, i32
  }
  func.func @transform_1(%arg0: i32) -> (i32, i32) {
    %c0_i32 = arith.constant 0 : i32
    %c0_i32_0 = arith.constant 0 : i32
    return %arg0, %c0_i32 : i32, i32
  }
}

</mosaic_0001>

<llo_original>
// kernel: _phase_shuffle_pallas.1
$region0: #{_phase_shuffle_pallas.1}
  #allocation0 [shape = 'u32[]', space=smem, size = 0x4, offset = 0x4, fixed_abs, tag = 'smem constant byte address 0x4 - core index']
  #allocation1 [shape = 'u32[144,128]{1,0:T(1,128)}', space=vmem, size = 0x12000, scoped, tag = 'internal scratch']
  %s0 = inlined_call_operand.hbm [shape: f32[128,128], index: 0, kind: input, shape index: {}]
  %s1 = inlined_call_operand.hbm [shape: f32[128,128], index: 1, kind: output, shape index: {}]
  %s2 = sld [smem:[#allocation0]]
  $region18: #{_phase_shuffle_pallas.1} parent=0
    _
  %s4 = ssub.s32 1, %s2
  %s5 = scalar_select 0, %s4, %s2
  $region1: #{_phase_shuffle_pallas.1} parent=0
    #allocation2 [shape = 'u8[65536]{0}', space=vmem, size = 0x10000, scoped, tag = 'input window, operand 0, single buffered']
    #allocation3 [shape = 's32[1]{0}', space=sflag, size = 0x4, scoped, tag = 'scoped memory for _phase_shuffle_pallas.1']
    #allocation4 [shape = 's32[1]{0}', space=sflag, size = 0x4, scoped, tag = 'scoped memory for _phase_shuffle_pallas.1']
    #allocation5 [shape = 'u8[65536]{0}', space=vmem, size = 0x10000, scoped, tag = 'output window, operand 0, single buffered']
    %6 = vsyncpa [#allocation3], 0
    %7 = vsyncpa [#allocation4], 0
    // Predicated region
    $region2: #{_phase_shuffle_pallas.1} parent=1 // pred_check
      _
    $region3: #{_phase_shuffle_pallas.1} parent=1 // pred_check_branch
      %9 = sbr.rel (0) target = $region5
    $region4: #{_phase_shuffle_pallas.1} parent=1 // pred_region
      %s11 = ssub.s32 2048, 2048
      %12 = vsyncadd [#allocation3], %s11
      %s13 = sshll.u32 [#allocation2], 4
      %s14 = int_to_ptr.vmem [resolvable:$true] %s13
      %19 = dma.hbm_to_vmem [thread:$0]  %s0, 2048, %s14, [#allocation3], 128, 128, 8
    $region5: #{_phase_shuffle_pallas.1} parent=1 // pred_fallthru
      _
    // Predicated region
    $region6: #{_phase_shuffle_pallas.1} parent=1 // pred_check
      _
    $region7: #{_phase_shuffle_pallas.1} parent=1 // pred_check_branch
      %21 = sbr.rel (0) target = $region9
    $region8: #{_phase_shuffle_pallas.1} parent=1 // pred_region
      %22 = dma.done [#allocation3], 2048
    $region9: #{_phase_shuffle_pallas.1} parent=1 // pred_fallthru
      _
    %v23 = vld [vmem:[#allocation2] sm:$0xff]
    %v24 = vld [vmem:[#allocation2 + $0x8] sm:$0xff]
    %v25 = vld [vmem:[#allocation2 + $0x10] sm:$0xff]
    %v26 = vld [vmem:[#allocation2 + $0x18] sm:$0xff]
    %v27 = vld [vmem:[#allocation2 + $0x20] sm:$0xff]
    %v28 = vld [vmem:[#allocation2 + $0x28] sm:$0xff]
    %v29 = vld [vmem:[#allocation2 + $0x30] sm:$0xff]
    %v30 = vld [vmem:[#allocation2 + $0x38] sm:$0xff]
    %v31 = vld [vmem:[#allocation2 + $0x40] sm:$0xff]
    %v32 = vld [vmem:[#allocation2 + $0x48] sm:$0xff]
    %v33 = vld [vmem:[#allocation2 + $0x50] sm:$0xff]
    %v34 = vld [vmem:[#allocation2 + $0x58] sm:$0xff]
    %v35 = vld [vmem:[#allocation2 + $0x60] sm:$0xff]
    %v36 = vld [vmem:[#allocation2 + $0x68] sm:$0xff]
    %v37 = vld [vmem:[#allocation2 + $0x70] sm:$0xff]
    %v38 = vld [vmem:[#allocation2 + $0x78] sm:$0xff]
    %39 = vrot.lane.b32.xlu0 %v23, 1
    %v40 = vpop.permute.xlu0 %39
    %41 = vrot.lane.b32.xlu0 %v24, 1
    %v42 = vpop.permute.xlu0 %41
    %43 = vrot.lane.b32.xlu0 %v25, 1
    %v44 = vpop.permute.xlu0 %43
    %45 = vrot.lane.b32.xlu0 %v26, 1
    %v46 = vpop.permute.xlu0 %45
    %47 = vrot.lane.b32.xlu0 %v27, 1
    %v48 = vpop.permute.xlu0 %47
    %49 = vrot.lane.b32.xlu0 %v28, 1
    %v50 = vpop.permute.xlu0 %49
    %51 = vrot.lane.b32.xlu0 %v29, 1
    %v52 = vpop.permute.xlu0 %51
    %53 = vrot.lane.b32.xlu0 %v30, 1
    %v54 = vpop.permute.xlu0 %53
    %55 = vrot.lane.b32.xlu0 %v31, 1
    %v56 = vpop.permute.xlu0 %55
    %57 = vrot.lane.b32.xlu0 %v32, 1
    %v58 = vpop.permute.xlu0 %57
    %59 = vrot.lane.b32.xlu0 %v33, 1
    %v60 = vpop.permute.xlu0 %59
    %61 = vrot.lane.b32.xlu0 %v34, 1
    %v62 = vpop.permute.xlu0 %61
    %63 = vrot.lane.b32.xlu0 %v35, 1
    %v64 = vpop.permute.xlu0 %63
    %65 = vrot.lane.b32.xlu0 %v36, 1
    %v66 = vpop.permute.xlu0 %65
    %67 = vrot.lane.b32.xlu0 %v37, 1
    %v68 = vpop.permute.xlu0 %67
    %69 = vrot.lane.b32.xlu0 %v38, 1
    %v70 = vpop.permute.xlu0 %69
    %71 = vst [vmem:[#allocation5] sm:$0xff] %v40
    %72 = vst [vmem:[#allocation5 + $0x8] sm:$0xff] %v42
    %73 = vst [vmem:[#allocation5 + $0x10] sm:$0xff] %v44
    %74 = vst [vmem:[#allocation5 + $0x18] sm:$0xff] %v46
    %75 = vst [vmem:[#allocation5 + $0x20] sm:$0xff] %v48
    %76 = vst [vmem:[#allocation5 + $0x28] sm:$0xff] %v50
    %77 = vst [vmem:[#allocation5 + $0x30] sm:$0xff] %v52
    %78 = vst [vmem:[#allocation5 + $0x38] sm:$0xff] %v54
    %79 = vst [vmem:[#allocation5 + $0x40] sm:$0xff] %v56
    %80 = vst [vmem:[#allocation5 + $0x48] sm:$0xff] %v58
    %81 = vst [vmem:[#allocation5 + $0x50] sm:$0xff] %v60
    %82 = vst [vmem:[#allocation5 + $0x58] sm:$0xff] %v62
    %83 = vst [vmem:[#allocation5 + $0x60] sm:$0xff] %v64
    %84 = vst [vmem:[#allocation5 + $0x68] sm:$0xff] %v66
    %85 = vst [vmem:[#allocation5 + $0x70] sm:$0xff] %v68
    %86 = vst [vmem:[#allocation5 + $0x78] sm:$0xff] %v70
    // Predicated region
    $region10: #{_phase_shuffle_pallas.1} parent=1 // pred_check
      _
    $region11: #{_phase_shuffle_pallas.1} parent=1 // pred_check_branch
      %88 = sbr.rel (0) target = $region13
    $region12: #{_phase_shuffle_pallas.1} parent=1 // pred_region
      %s90 = ssub.s32 2048, 2048
      %91 = vsyncadd [#allocation4], %s90
      %s92 = sshll.u32 [#allocation5], 4
      %s93 = int_to_ptr.vmem [resolvable:$true] %s92
      %98 = dma.vmem_to_hbm [thread:$0]  %s93, 2048, %s1, [#allocation4], 128, 128, 8
    $region13: #{_phase_shuffle_pallas.1} parent=1 // pred_fallthru
      _
    // Predicated region
    $region14: #{_phase_shuffle_pallas.1} parent=1 // pred_check
      _
    $region15: #{_phase_shuffle_pallas.1} parent=1 // pred_check_branch
      %100 = sbr.rel (0) target = $region17
    $region16: #{_phase_shuffle_pallas.1} parent=1 // pred_region
      %101 = dma.done [#allocation4], 2048
    $region17: #{_phase_shuffle_pallas.1} parent=1 // pred_fallthru
      _
    %102 = vsyncpa [#allocation3], 1
    %103 = vsyncpa [#allocation4], 1

</llo_original>
